<compile_context>
chip_gen: v6e
topology: v6e:2x2x1
jax: 0.10.0
libtpu: 0.0.40
codegen_flags: <defaults>
</compile_context>

<pallas_src>
import functools

import jax
import jax.numpy as jnp
from jax import lax
from jax.experimental import pallas as pl
from jax.experimental.pallas import tpu as pltpu


def _shift_kernel(shift_ref, x_ref, o_ref, xp_ref, *, pad: int, block_b: int,
                  lead: int):
    # shift_ref: (2*N,) int32 in SMEM (scalar prefetch); [2*i] = x-shift (width),
    #            [2*i + 1] = y-shift (height) -- matches torch grid[..., 0/1].
    # x_ref / o_ref: (B, C, H, W) VMEM tiles for the current block of samples.
    # xp_ref: (B, C, lead + H + pad, W) VMEM scratch, row-replicate-padded copy.
    _, c, h, w = x_ref.shape
    base = pl.program_id(0) * block_b

    # Row-replicate-padded copy of the whole block.  Interior rows land at an
    # 8-aligned sublane offset (`lead`) so this is a plain aligned store.
    xp_ref[:, :, lead:lead + h, :] = x_ref[...]
    if pad > 0:
        top = jnp.broadcast_to(x_ref[:, :, 0:1, :], (block_b, c, pad, w))
        bot = jnp.broadcast_to(x_ref[:, :, h - 1:h, :], (block_b, c, pad, w))
        xp_ref[:, :, lead - pad:lead, :] = top
        xp_ref[:, :, lead + h:lead + h + pad, :] = bot

    # Iotas for the one-hot column-selection matrix (loop-invariant; hoisted).
    l_idx = lax.broadcasted_iota(jnp.int32, (w, w), 0)   # source col l
    j_idx = lax.broadcasted_iota(jnp.int32, (w, w), 1)   # output col j

    @pl.loop(0, block_b)
    def _(b):
        gb = base + b
        sx = shift_ref[2 * gb]        # width shift  (torch grid[..., 0])
        sy = shift_ref[2 * gb + 1]    # height shift (torch grid[..., 1])

        # SxT[l, j] = 1 iff l == clamp(j + sx - pad, 0, w-1); out = rows @ SxT.
        sel_xt = (l_idx == jnp.clip(j_idx + sx - pad, 0, w - 1)).astype(jnp.float32)
        row0 = lead - pad + sy        # start of the shifted crop inside xp

        @pl.loop(0, c)
        def _(ci):
            # Row shift with replicate clamping = one dynamic sublane slice.
            rows = xp_ref[b, ci, pl.ds(row0, h), :].astype(jnp.float32)     # (h, w)
            out = jnp.dot(rows, sel_xt, preferred_element_type=jnp.float32)  # (h, w)
            o_ref[b, ci] = out.astype(o_ref.dtype)


def _pick_block_b(n: int, per_sample_bytes: int, budget_bytes: int = 24 << 20) -> int:
    b = max(1, min(n, budget_bytes // per_sample_bytes))
    while n % b:
        b -= 1
    return b


def random_shifts_aug(x, shifts, pad: int = 4):
    """x: (N, C, H, W) float; shifts: (N, 2) int32 in [0, 2*pad]
    ([:, 0] = x/width shift, [:, 1] = y/height shift)."""
    n, c, h, w = x.shape
    assert h == w
    lead = ((pad + 7) // 8) * 8 if pad > 0 else 0   # 8-aligned interior offset
    itemsize = x.dtype.itemsize
    # in + out double-buffered (~4 copies of the block) + padded scratch.
    per_sample_bytes = c * w * itemsize * (4 * h + (lead + h + pad))
    block_b = _pick_block_b(n, per_sample_bytes)

    # Flatten to 1-D so the scalar-prefetch table stays tiny in SMEM.
    shifts_flat = shifts.astype(jnp.int32).reshape(-1)

    kernel = functools.partial(_shift_kernel, pad=pad, block_b=block_b, lead=lead)
    grid_spec = pltpu.PrefetchScalarGridSpec(
        num_scalar_prefetch=1,            # shifts -> SMEM
        grid=(n // block_b,),
        in_specs=[pl.BlockSpec((block_b, c, h, w), lambda g, s: (g, 0, 0, 0))],
        out_specs=pl.BlockSpec((block_b, c, h, w), lambda g, s: (g, 0, 0, 0)),
        scratch_shapes=[pltpu.VMEM((block_b, c, lead + h + pad, w), x.dtype)],
    )
    return pl.pallas_call(
        kernel,
        out_shape=jax.ShapeDtypeStruct((n, c, h, w), x.dtype),
        grid_spec=grid_spec,
        compiler_params=pltpu.CompilerParams(
            dimension_semantics=("parallel",),
            vmem_limit_bytes=48 * 1024 * 1024,
        ),
    )(shifts_flat, x)


def _reference(x, shifts, pad):
    # Pure-JAX reference: replicate pad via clamped gather.
    n, c, h, w = x.shape
    idx = jnp.arange(h)
    outs = []
    for b in range(n):
        sx, sy = shifts[b, 0], shifts[b, 1]
        rows = jnp.clip(idx + sy - pad, 0, h - 1)
        cols = jnp.clip(idx + sx - pad, 0, w - 1)
        outs.append(x[b][:, rows][:, :, cols])
    return jnp.stack(outs)


if __name__ == "__main__":
    key = jax.random.PRNGKey(0)
    kx, ks = jax.random.split(key)

    n, c, h, w = 2, 4, 16, 16
    pad = 4

    x = jax.random.normal(kx, (n, c, h, w), dtype=jnp.float32)
    # TODO(synk): torch.randint's RNG stream cannot be reproduced; shifts are
    # drawn with jax.random instead and fed to the kernel via scalar prefetch.
    shifts = jax.random.randint(ks, (n, 2), 0, 2 * pad + 1, dtype=jnp.int32)

    out = random_shifts_aug(x, shifts, pad=pad)
    out = jax.block_until_ready(out)

    ref = _reference(x, shifts, pad)
    assert out.shape == (n, c, h, w) and out.dtype == x.dtype
    assert jnp.allclose(out, ref, atol=1e-5), float(jnp.max(jnp.abs(out - ref)))
    print("KERNEL_OK")
</pallas_src>

<mosaic_0001>
module attributes {stable_mosaic.version = 11 : i64} {
  func.func @_shift_kernel(%arg0: i32, %arg1: memref<4xi32, #tpu.memory_space<smem>>, %arg2: memref<2x4x16x16xf32, #tpu.memory_space<vmem>>, %arg3: memref<2x4x16x16xf32, #tpu.memory_space<vmem>>, %arg4: memref<2x4x28x16xf32, #tpu.memory_space<vmem>>) attributes {dimension_semantics = [#tpu.dimension_semantics<parallel>], iteration_bounds = array<i64: 1>, scalar_prefetch = 1 : i64, scratch_operands = 1 : i64, tpu.core_type = #tpu.core_type<tc>, window_params = [{transform_indices = @transform_0, window_bounds = array<i64: 2, 4, 16, 16>}, {transform_indices = @transform_1, window_bounds = array<i64: 2, 4, 16, 16>}]} {
    %c2_i32 = arith.constant 2 : i32
    %0 = arith.muli %arg0, %c2_i32 : i32
    %c0 = arith.constant 0 : index
    %c0_0 = arith.constant 0 : index
    %c0_1 = arith.constant 0 : index
    %c0_2 = arith.constant 0 : index
    %1 = vector.load %arg2[%c0, %c0_0, %c0_1, %c0_2] : memref<2x4x16x16xf32, #tpu.memory_space<vmem>>, vector<2x4x16x16xf32>
    %c0_3 = arith.constant 0 : index
    %c0_4 = arith.constant 0 : index
    %c8 = arith.constant 8 : index
    %c0_5 = arith.constant 0 : index
    %2 = vector.load %arg4[%c0_3, %c0_4, %c8, %c0_5] : memref<2x4x28x16xf32, #tpu.memory_space<vmem>>, vector<2x4x16x16xf32>
    tpu.vector_store %arg4[%c0_3, %c0_4, %c8, %c0_5], %1 {strides = array<i32>} : memref<2x4x28x16xf32, #tpu.memory_space<vmem>>, vector<2x4x16x16xf32>,
    %c0_6 = arith.constant 0 : index
    %c0_7 = arith.constant 0 : index
    %c0_8 = arith.constant 0 : index
    %c0_9 = arith.constant 0 : index
    %3 = vector.load %arg2[%c0_6, %c0_7, %c0_8, %c0_9] : memref<2x4x16x16xf32, #tpu.memory_space<vmem>>, vector<2x4x1x16xf32>
    %4 = vector.shape_cast %3 : vector<2x4x1x16xf32> to vector<2x4x1x16xf32>
    %5 = vector.broadcast %4 : vector<2x4x1x16xf32> to vector<2x4x4x16xf32>
    %c0_10 = arith.constant 0 : index
    %c0_11 = arith.constant 0 : index
    %c15 = arith.constant 15 : index
    %c0_12 = arith.constant 0 : index
    %6 = vector.load %arg2[%c0_10, %c0_11, %c15, %c0_12] : memref<2x4x16x16xf32, #tpu.memory_space<vmem>>, vector<2x4x1x16xf32>
    %7 = vector.shape_cast %6 : vector<2x4x1x16xf32> to vector<2x4x1x16xf32>
    %8 = vector.broadcast %7 : vector<2x4x1x16xf32> to vector<2x4x4x16xf32>
    %c0_13 = arith.constant 0 : index
    %c0_14 = arith.constant 0 : index
    %c4 = arith.constant 4 : index
    %c0_15 = arith.constant 0 : index
    %9 = vector.load %arg4[%c0_13, %c0_14, %c4, %c0_15] : memref<2x4x28x16xf32, #tpu.memory_space<vmem>>, vector<2x4x4x16xf32>
    tpu.vector_store %arg4[%c0_13, %c0_14, %c4, %c0_15], %5 {strides = array<i32>} : memref<2x4x28x16xf32, #tpu.memory_space<vmem>>, vector<2x4x4x16xf32>,
    %c0_16 = arith.constant 0 : index
    %c0_17 = arith.constant 0 : index
    %c24 = arith.constant 24 : index
    %c0_18 = arith.constant 0 : index
    %10 = vector.load %arg4[%c0_16, %c0_17, %c24, %c0_18] : memref<2x4x28x16xf32, #tpu.memory_space<vmem>>, vector<2x4x4x16xf32>
    tpu.vector_store %arg4[%c0_16, %c0_17, %c24, %c0_18], %8 {strides = array<i32>} : memref<2x4x28x16xf32, #tpu.memory_space<vmem>>, vector<2x4x4x16xf32>,
    %11 = tpu.iota {dimensions = array<i32: 0>} : vector<16x16xi32>
    %12 = tpu.iota {dimensions = array<i32: 1>} : vector<16x16xi32>
    %c0_i32 = arith.constant 0 : i32
    %c2_i32_19 = arith.constant 2 : i32
    %13 = arith.addi %c0_i32, %c2_i32_19 : i32
    %c1_i32 = arith.constant 1 : i32
    scf.for %arg5 = %c0_i32 to %13 step %c1_i32  : i32 {
      %c1_i32_21 = arith.constant 1 : i32
      %14 = arith.muli %arg5, %c1_i32_21 : i32
      %c0_i32_22 = arith.constant 0 : i32
      %15 = arith.addi %c0_i32_22, %14 : i32
      %16 = arith.addi %0, %15 : i32
      %c2_i32_23 = arith.constant 2 : i32
      %17 = arith.muli %c2_i32_23, %16 : i32
      %18 = arith.index_cast %17 : i32 to index
      %19 = memref.load %arg1[%18] : memref<4xi32, #tpu.memory_space<smem>>
      %c2_i32_24 = arith.constant 2 : i32
      %20 = arith.muli %c2_i32_24, %16 : i32
      %c1_i32_25 = arith.constant 1 : i32
      %21 = arith.addi %20, %c1_i32_25 : i32
      %22 = arith.index_cast %21 : i32 to index
      %23 = memref.load %arg1[%22] : memref<4xi32, #tpu.memory_space<smem>>
      %24 = vector.broadcast %19 : i32 to vector<16x16xi32>
      %25 = arith.addi %12, %24 : vector<16x16xi32>
      %c4_i32 = arith.constant 4 : i32
      %26 = vector.broadcast %c4_i32 : i32 to vector<16x16xi32>
      %27 = arith.subi %25, %26 : vector<16x16xi32>
      %c0_i32_26 = arith.constant 0 : i32
      %c15_i32 = arith.constant 15 : i32
      %28 = vector.broadcast %c0_i32_26 : i32 to vector<16x16xi32>
      %29 = arith.maxsi %28, %27 : vector<16x16xi32>
      %30 = vector.broadcast %c15_i32 : i32 to vector<16x16xi32>
      %31 = arith.minsi %30, %29 : vector<16x16xi32>
      %32 = arith.cmpi eq, %11, %31 : vector<16x16xi32>
      %33 = arith.extui %32 : vector<16x16xi1> to vector<16x16xi32>
      %34 = arith.sitofp %33 : vector<16x16xi32> to vector<16x16xf32>
      %c4_i32_27 = arith.constant 4 : i32
      %35 = arith.addi %c4_i32_27, %23 : i32
      %c0_i32_28 = arith.constant 0 : i32
      %c4_i32_29 = arith.constant 4 : i32
      %36 = arith.addi %c0_i32_28, %c4_i32_29 : i32
      %c1_i32_30 = arith.constant 1 : i32
      scf.for %arg6 = %c0_i32_28 to %36 step %c1_i32_30  : i32 {
        %c1_i32_32 = arith.constant 1 : i32
        %37 = arith.muli %arg6, %c1_i32_32 : i32
        %c0_i32_33 = arith.constant 0 : i32
        %38 = arith.addi %c0_i32_33, %37 : i32
        %39 = arith.index_cast %15 : i32 to index
        %40 = arith.index_cast %38 : i32 to index
        %41 = arith.index_cast %35 : i32 to index
        %c0_34 = arith.constant 0 : index
        %42 = vector.load %arg4[%39, %40, %41, %c0_34] : memref<2x4x28x16xf32, #tpu.memory_space<vmem>>, vector<1x1x16x16xf32>
        %43 = vector.shape_cast %42 : vector<1x1x16x16xf32> to vector<16x16xf32>
        %cst = arith.constant dense<0.000000e+00> : vector<16x16xf32>
        %44 = tpu.matmul %43, %34, %cst {dimension_numbers = #tpu.dot_dimension_numbers<[1], [0], [0], [1], [0, 0, 1, 1], [], []>} : vector<16x16xf32>, vector<16x16xf32>, vector<16x16xf32> -> vector<16x16xf32>
        %45 = arith.index_cast %15 : i32 to index
        %46 = arith.index_cast %38 : i32 to index
        %c0_35 = arith.constant 0 : index
        %c0_36 = arith.constant 0 : index
        %47 = vector.load %arg3[%45, %46, %c0_35, %c0_36] : memref<2x4x16x16xf32, #tpu.memory_space<vmem>>, vector<1x1x16x16xf32>
        %48 = vector.shape_cast %47 : vector<1x1x16x16xf32> to vector<16x16xf32>
        %49 = vector.shape_cast %44 : vector<16x16xf32> to vector<1x1x16x16xf32>
        tpu.vector_store %arg3[%45, %46, %c0_35, %c0_36], %49 {strides = array<i32>} : memref<2x4x16x16xf32, #tpu.memory_space<vmem>>, vector<1x1x16x16xf32>,
      }
      %c4_i32_31 = arith.constant 4 : i32
    }
    %c2_i32_20 = arith.constant 2 : i32
    return
  }
  func.func @transform_0(%arg0: i32, %arg1: memref<4xi32, #tpu.memory_space<smem>>) -> (i32, i32, i32, i32) {
    %c0_i32 = arith.constant 0 : i32
    %c0_i32_0 = arith.constant 0 : i32
    %c0_i32_1 = arith.constant 0 : i32
    %c0_i32_2 = arith.constant 0 : i32
    return %arg0, %c0_i32, %c0_i32_0, %c0_i32_1 : i32, i32, i32, i32
  }
  func.func @transform_1(%arg0: i32, %arg1: memref<4xi32, #tpu.memory_space<smem>>) -> (i32, i32, i32, i32) {
    %c0_i32 = arith.constant 0 : i32
    %c0_i32_0 = arith.constant 0 : i32
    %c0_i32_1 = arith.constant 0 : i32
    %c0_i32_2 = arith.constant 0 : i32
    return %arg0, %c0_i32, %c0_i32_0, %c0_i32_1 : i32, i32, i32, i32
  }
}

</mosaic_0001>

<llo_original>
// kernel: tpu_custom_call.1
$region0: #{tpu_custom_call.1}
  #allocation0 [shape = 'u32[]', space=smem, size = 0x4, offset = 0x4, fixed_abs, tag = 'smem constant byte address 0x4 - core index']
  #allocation1 [shape = 'u32[144,128]{1,0:T(1,128)}', space=vmem, size = 0x12000, scoped, tag = 'internal scratch']
  #allocation2 [shape = 'f32[2,4,28,16]{3,2,1,0:T(8,128)}', space=vmem, size = 0x20000, scoped, tag = 'scratch operand']
  #allocation3 [shape = 's32[1]{0}', space=sflag, size = 0x4, scoped, tag = 'scoped memory for tpu_custom_call.1']
  #allocation4 [shape = 'u8[512]{0}', space=smem, size = 0x200, scoped, tag = 'prefetched SMEM operand 0']
  %s0 = inlined_call_operand.hbm [shape: s32[4], index: 0, kind: input, shape index: {}]
  %s1 = inlined_call_operand.hbm [shape: f32[2,4,16,16], index: 1, kind: input, shape index: {}]
  %s2 = inlined_call_operand.hbm [shape: f32[2,4,16,16], index: 2, kind: output, shape index: {}]
  %s3 = sld [smem:[#allocation0]]
  $region32: #{tpu_custom_call.1} parent=0
    _
  %s5 = ssub.s32 1, %s3
  %s6 = scalar_select 0, %s5, %s3
  %8 = dma.hbm_to_smem %s0, 16, [#allocation4], [#allocation3]
  %9 = dma.done [#allocation3], 16
  %10 = sfence
  $region1: #{tpu_custom_call.1} parent=0
    #allocation5 [shape = 'u8[65536]{0}', space=vmem, size = 0x10000, scoped, tag = 'input window, operand 1, single buffered']
    #allocation6 [shape = 's32[1]{0}', space=sflag, size = 0x4, scoped, tag = 'scoped memory for tpu_custom_call.1']
    #allocation7 [shape = 's32[1]{0}', space=sflag, size = 0x4, scoped, tag = 'scoped memory for tpu_custom_call.1']
    #allocation8 [shape = 'u8[65536]{0}', space=vmem, size = 0x10000, scoped, tag = 'output window, operand 0, single buffered']
    %11 = vsyncpa [#allocation6], 0
    %12 = vsyncpa [#allocation7], 0
    // Predicated region
    $region2: #{tpu_custom_call.1} parent=1 // pred_check
      _
    $region3: #{tpu_custom_call.1} parent=1 // pred_check_branch
      %14 = sbr.rel (0) target = $region5
    $region4: #{tpu_custom_call.1} parent=1 // pred_region
      %s16 = ssub.s32 2048, 2048
      %17 = vsyncadd [#allocation6], %s16
      %s18 = sshll.u32 [#allocation5], 4
      %s19 = int_to_ptr.vmem [resolvable:$true] %s18
      %24 = dma.hbm_to_vmem [thread:$0]  %s1, 2048, %s19, [#allocation6], 128, 128, 8
    $region5: #{tpu_custom_call.1} parent=1 // pred_fallthru
      _
    // Predicated region
    $region6: #{tpu_custom_call.1} parent=1 // pred_check
      _
    $region7: #{tpu_custom_call.1} parent=1 // pred_check_branch
      %26 = sbr.rel (0) target = $region9
    $region8: #{tpu_custom_call.1} parent=1 // pred_region
      %27 = dma.done [#allocation6], 2048
    $region9: #{tpu_custom_call.1} parent=1 // pred_fallthru
      _
    %s28 = smul.u32 0, 2
    %v29 = vld [vmem:[#allocation5] sm:$0xff]
    %v30 = vld [vmem:[#allocation5 + $0x8] sm:$0xff]
    %v31 = vld [vmem:[#allocation5 + $0x10] sm:$0xff]
    %v32 = vld [vmem:[#allocation5 + $0x18] sm:$0xff]
    %v33 = vld [vmem:[#allocation5 + $0x20] sm:$0xff]
    %v34 = vld [vmem:[#allocation5 + $0x28] sm:$0xff]
    %v35 = vld [vmem:[#allocation5 + $0x30] sm:$0xff]
    %v36 = vld [vmem:[#allocation5 + $0x38] sm:$0xff]
    %v37 = vld [vmem:[#allocation5 + $0x40] sm:$0xff]
    %v38 = vld [vmem:[#allocation5 + $0x48] sm:$0xff]
    %v39 = vld [vmem:[#allocation5 + $0x50] sm:$0xff]
    %v40 = vld [vmem:[#allocation5 + $0x58] sm:$0xff]
    %v41 = vld [vmem:[#allocation5 + $0x60] sm:$0xff]
    %v42 = vld [vmem:[#allocation5 + $0x68] sm:$0xff]
    %v43 = vld [vmem:[#allocation5 + $0x70] sm:$0xff]
    %v44 = vld [vmem:[#allocation5 + $0x78] sm:$0xff]
    %vm45 = vcmask 130048
    %46 = vst.msk [vmem:[#allocation2 + $0x8] sm:$0xff] %vm45, %v29
    %47 = vst.msk [vmem:[#allocation2 + $0x10] sm:$0xff] %vm45, %v30
    %48 = vst.msk [vmem:[#allocation2 + $0x28] sm:$0xff] %vm45, %v31
    %49 = vst.msk [vmem:[#allocation2 + $0x30] sm:$0xff] %vm45, %v32
    %50 = vst.msk [vmem:[#allocation2 + $0x48] sm:$0xff] %vm45, %v33
    %51 = vst.msk [vmem:[#allocation2 + $0x50] sm:$0xff] %vm45, %v34
    %52 = vst.msk [vmem:[#allocation2 + $0x68] sm:$0xff] %vm45, %v35
    %53 = vst.msk [vmem:[#allocation2 + $0x70] sm:$0xff] %vm45, %v36
    %54 = vst.msk [vmem:[#allocation2 + $0x88] sm:$0xff] %vm45, %v37
    %55 = vst.msk [vmem:[#allocation2 + $0x90] sm:$0xff] %vm45, %v38
    %56 = vst.msk [vmem:[#allocation2 + $0xa8] sm:$0xff] %vm45, %v39
    %57 = vst.msk [vmem:[#allocation2 + $0xb0] sm:$0xff] %vm45, %v40
    %58 = vst.msk [vmem:[#allocation2 + $0xc8] sm:$0xff] %vm45, %v41
    %59 = vst.msk [vmem:[#allocation2 + $0xd0] sm:$0xff] %vm45, %v42
    %60 = vst.msk [vmem:[#allocation2 + $0xe8] sm:$0xff] %vm45, %v43
    %61 = vst.msk [vmem:[#allocation2 + $0xf0] sm:$0xff] %vm45, %v44
    %v62 = vld [vmem:[#allocation5] sm:$0x1]
    %v63 = vld [vmem:[#allocation5 + $0x10] sm:$0x1]
    %v64 = vld [vmem:[#allocation5 + $0x20] sm:$0x1]
    %v65 = vld [vmem:[#allocation5 + $0x30] sm:$0x1]
    %v66 = vld [vmem:[#allocation5 + $0x40] sm:$0x1]
    %v67 = vld [vmem:[#allocation5 + $0x50] sm:$0x1]
    %v68 = vld [vmem:[#allocation5 + $0x60] sm:$0x1]
    %v69 = vld [vmem:[#allocation5 + $0x70] sm:$0x1]
    %v70 = vlaneseq
    %v71 = vshrl.u32 %v70, 7
    %v72 = vsub.s32 0, %v71
    %v73 = vrot.slane %v62, %v72
    %v74 = vlaneseq
    %v75 = vshrl.u32 %v74, 7
    %v76 = vsub.s32 0, %v75
    %v77 = vrot.slane %v63, %v76
    %v78 = vlaneseq
    %v79 = vshrl.u32 %v78, 7
    %v80 = vsub.s32 0, %v79
    %v81 = vrot.slane %v64, %v80
    %v82 = vlaneseq
    %v83 = vshrl.u32 %v82, 7
    %v84 = vsub.s32 0, %v83
    %v85 = vrot.slane %v65, %v84
    %v86 = vlaneseq
    %v87 = vshrl.u32 %v86, 7
    %v88 = vsub.s32 0, %v87
    %v89 = vrot.slane %v66, %v88
    %v90 = vlaneseq
    %v91 = vshrl.u32 %v90, 7
    %v92 = vsub.s32 0, %v91
    %v93 = vrot.slane %v67, %v92
    %v94 = vlaneseq
    %v95 = vshrl.u32 %v94, 7
    %v96 = vsub.s32 0, %v95
    %v97 = vrot.slane %v68, %v96
    %v98 = vlaneseq
    %v99 = vshrl.u32 %v98, 7
    %v100 = vsub.s32 0, %v99
    %v101 = vrot.slane %v69, %v100
    %v102 = vld [vmem:[#allocation5 + $0xf] sm:$0x1]
    %v103 = vld [vmem:[#allocation5 + $0x1f] sm:$0x1]
    %v104 = vld [vmem:[#allocation5 + $0x2f] sm:$0x1]
    %v105 = vld [vmem:[#allocation5 + $0x3f] sm:$0x1]
    %v106 = vld [vmem:[#allocation5 + $0x4f] sm:$0x1]
    %v107 = vld [vmem:[#allocation5 + $0x5f] sm:$0x1]
    %v108 = vld [vmem:[#allocation5 + $0x6f] sm:$0x1]
    %v109 = vld [vmem:[#allocation5 + $0x7f] sm:$0x1]
    %v110 = vlaneseq
    %v111 = vshrl.u32 %v110, 7
    %v112 = vsub.s32 0, %v111
    %v113 = vrot.slane %v102, %v112
    %v114 = vlaneseq
    %v115 = vshrl.u32 %v114, 7
    %v116 = vsub.s32 0, %v115
    %v117 = vrot.slane %v103, %v116
    %v118 = vlaneseq
    %v119 = vshrl.u32 %v118, 7
    %v120 = vsub.s32 0, %v119
    %v121 = vrot.slane %v104, %v120
    %v122 = vlaneseq
    %v123 = vshrl.u32 %v122, 7
    %v124 = vsub.s32 0, %v123
    %v125 = vrot.slane %v105, %v124
    %v126 = vlaneseq
    %v127 = vshrl.u32 %v126, 7
    %v128 = vsub.s32 0, %v127
    %v129 = vrot.slane %v106, %v128
    %v130 = vlaneseq
    %v131 = vshrl.u32 %v130, 7
    %v132 = vsub.s32 0, %v131
    %v133 = vrot.slane %v107, %v132
    %v134 = vlaneseq
    %v135 = vshrl.u32 %v134, 7
    %v136 = vsub.s32 0, %v135
    %v137 = vrot.slane %v108, %v136
    %v138 = vlaneseq
    %v139 = vshrl.u32 %v138, 7
    %v140 = vsub.s32 0, %v139
    %v141 = vrot.slane %v109, %v140
    %vm142 = vcmask 125952
    %143 = vst.msk [vmem:[#allocation2 + $0x4] sm:$0xf] %vm142, %v73
    %144 = vst.msk [vmem:[#allocation2 + $0x24] sm:$0xf] %vm142, %v77
    %145 = vst.msk [vmem:[#allocation2 + $0x44] sm:$0xf] %vm142, %v81
    %146 = vst.msk [vmem:[#allocation2 + $0x64] sm:$0xf] %vm142, %v85
    %147 = vst.msk [vmem:[#allocation2 + $0x84] sm:$0xf] %vm142, %v89
    %148 = vst.msk [vmem:[#allocation2 + $0xa4] sm:$0xf] %vm142, %v93
    %149 = vst.msk [vmem:[#allocation2 + $0xc4] sm:$0xf] %vm142, %v97
    %150 = vst.msk [vmem:[#allocation2 + $0xe4] sm:$0xf] %vm142, %v101
    %151 = vst.msk [vmem:[#allocation2 + $0x18] sm:$0xf] %vm142, %v113
    %152 = vst.msk [vmem:[#allocation2 + $0x38] sm:$0xf] %vm142, %v117
    %153 = vst.msk [vmem:[#allocation2 + $0x58] sm:$0xf] %vm142, %v121
    %154 = vst.msk [vmem:[#allocation2 + $0x78] sm:$0xf] %vm142, %v125
    %155 = vst.msk [vmem:[#allocation2 + $0x98] sm:$0xf] %vm142, %v129
    %156 = vst.msk [vmem:[#allocation2 + $0xb8] sm:$0xf] %vm142, %v133
    %157 = vst.msk [vmem:[#allocation2 + $0xd8] sm:$0xf] %vm142, %v137
    %158 = vst.msk [vmem:[#allocation2 + $0xf8] sm:$0xf] %vm142, %v141
    %v159 = vlaneseq
    %v160 = vshrl.u32 %v159, 7
    %v161 = vadd.s32 %v160, 8
    %v162 = vlaneseq
    %v163 = vand.u32 %v162, 127
    loop: start=0, step=1, limit=2
    $region10: #{tpu_custom_call.1} parent=1 // loop_pre_header
      _
    $region11: #{tpu_custom_call.1} parent=1 // loop_header
      %s165 = sphi 0, %s169
      %p166 = scmp.ge.s32.totalorder %s165, 2
    $region12: #{tpu_custom_call.1} parent=1 // loop_header_branch
      %168 = sbr.rel (%p166) target = $region16
    $region13: #{tpu_custom_call.1} parent=1 // loop_body
      %s170 = sadd.s32 %s28, %s165
      %s171 = smul.u32 %s170, 2
      %s172 = sld [smem:[#allocation4 + %s171]]
      %s173 = sadd.s32 %s171, 1
      %s174 = sld [smem:[#allocation4 + %s173]]
      %v175 = vstv %s172
      %v176 = vadd.s32 %v163, %v175
      %v177 = vsub.s32 %v176, 4
      %vm178 = vcmp.gt.s32.totalorder %v177, 0
      %v179 = vsel %vm178, %v177, 0
      %vm180 = vcmp.lt.s32.totalorder %v179, 15
      %v181 = vsel %vm180, %v179, 15
      %vm182 = vcmp.eq.s32.totalorder %v160, %v181
      %vm183 = vcmp.eq.s32.totalorder %v161, %v181
      %v184 = vsel %vm182, 1, 0
      %v185 = vsel %vm183, 1, 0
      %v186 = vcvt.s32.f32 %v184
      %v187 = vcvt.s32.f32 %v185
      %s188 = sadd.s32 %s174, 4
      loop: start=0, step=1, limit=4
      $region17: #{tpu_custom_call.1} parent=13 // loop_pre_header
        _
      $region18: #{tpu_custom_call.1} parent=13 // loop_header
        %s190 = sphi 0, %s194
        %p191 = scmp.ge.s32.totalorder %s190, 4
      $region19: #{tpu_custom_call.1} parent=13 // loop_header_branch
        %193 = sbr.rel (%p191) target = $region23
      $region20: #{tpu_custom_call.1} parent=13 // loop_body
        %s195 = smul.u32 %s190, 32
        %s196 = sadd.s32 %s188, %s195
        %s197 = smul.u32 %s165, 128
        %s198 = sadd.s32 %s196, %s197
        %s199 = scalar_lea.vmem [#allocation2], %s198
        %v200 = vld [vmem:[%s199] sm:$0xff]
        %v201 = vld [vmem:[%s199 + $0x8] sm:$0xff]
        %v203 = vsel %vm45, %v200, 0
        %v206 = vsel %vm45, %v201, 0
        %208 = vmatprep.subr.mxu0 0.0
        %209 = vmatpush1.msra.mxu0 0.0
        %210 = vmatprep.subr.mxu0 0.0
        %211 = vmatpush1.msra.mxu0 0.0
        %212 = vmatprep.subr.mxu0 0.0
        %213 = vmatpush1.msra.mxu0 0.0
        %214 = vmatprep.subr.mxu0 0.0
        %215 = vmatpush1.msra.mxu0 0.0
        %216 = vmatprep.subr.mxu0 0.0
        %217 = vmatpush1.msra.mxu0 0.0
        %218 = vmatprep.subr.mxu0 0.0
        %219 = vmatpush1.msra.mxu0 0.0
        %220 = vmatprep.subr.mxu0 0.0
        %221 = vmatpush1.msra.mxu0 0.0
        %222 = vmatprep.subr.mxu0 0.0
        %223 = vmatpush1.msra.mxu0 0.0
        %224 = vmatprep.subr.mxu0 0.0
        %225 = vmatpush1.msra.mxu0 0.0
        %226 = vmatprep.subr.mxu0 0.0
        %227 = vmatpush1.msra.mxu0 0.0
        %228 = vmatprep.subr.mxu0 0.0
        %229 = vmatpush1.msra.mxu0 0.0
        %230 = vmatprep.subr.mxu0 0.0
        %231 = vmatpush1.msra.mxu0 0.0
        %232 = vmatprep.subr.mxu0 0.0
        %233 = vmatpush1.msra.mxu0 0.0
        %234 = vmatprep.subr.mxu0 0.0
        %235 = vmatpush1.msra.mxu0 0.0
        %236 = vmatprep.subr.mxu0 0.0
        %237 = vmatpush1.msra.mxu0 %v187
        %238 = vmatprep.subr.mxu0 0.0
        %239 = vmatpush1.msra.mxu0 %v186
        %240 = vmatprep.subr.mxu0 0.0
        %241 = vmatpush2.msra.mxu0 0.0
        %242 = vmatprep.subr.mxu0 0.0
        %243 = vmatpush2.msra.mxu0 0.0
        %244 = vmatprep.subr.mxu0 0.0
        %245 = vmatpush2.msra.mxu0 0.0
        %246 = vmatprep.subr.mxu0 0.0
        %247 = vmatpush2.msra.mxu0 0.0
        %248 = vmatprep.subr.mxu0 0.0
        %249 = vmatpush2.msra.mxu0 0.0
        %250 = vmatprep.subr.mxu0 0.0
        %251 = vmatpush2.msra.mxu0 0.0
        %252 = vmatprep.subr.mxu0 0.0
        %253 = vmatpush2.msra.mxu0 0.0
        %254 = vmatprep.subr.mxu0 0.0
        %255 = vmatpush2.msra.mxu0 0.0
        %256 = vmatprep.subr.mxu0 0.0
        %257 = vmatpush2.msra.mxu0 0.0
        %258 = vmatprep.subr.mxu0 0.0
        %259 = vmatpush2.msra.mxu0 0.0
        %260 = vmatprep.subr.mxu0 0.0
        %261 = vmatpush2.msra.mxu0 0.0
        %262 = vmatprep.subr.mxu0 0.0
        %263 = vmatpush2.msra.mxu0 0.0
        %264 = vmatprep.subr.mxu0 0.0
        %265 = vmatpush2.msra.mxu0 0.0
        %266 = vmatprep.subr.mxu0 0.0
        %267 = vmatpush2.msra.mxu0 0.0
        %268 = vmatprep.subr.mxu0 0.0
        %269 = vmatpush2.msra.mxu0 0.0
        %270 = vmatprep.subr.mxu0 0.0
        %271 = vmatpush2.msra.mxu0 0.0
        %272 = vmatprep.mubr.f32.mxu0 0.0
        %273 = vmatmul.mubr.f32.gmra.mxu0 %v203
        %v274 = vpop.f32.mrf.mxu0
        %v275 = vadd.f32 0.0, %v274
        %v276 = vpop.f32.mrf.mxu0
        %277 = vmatprep.mubr.f32.mxu0 0.0
        %278 = vmatmul.mubr.f32.gmra.mxu0 %v206
        %v279 = vpop.f32.mrf.mxu0
        %v280 = vadd.f32 0.0, %v279
        %v281 = vpop.f32.mrf.mxu0
        %282 = vdwg.mxu0
        %s283 = smul.u32 %s190, 16
        %s284 = smul.u32 %s165, 64
        %s285 = sadd.s32 %s283, %s284
        %s286 = scalar_lea.vmem [#allocation8], %s285
        %287 = vst.msk [vmem:[%s286] sm:$0xff] %vm45, %v275
        %288 = vst.msk [vmem:[%s286 + $0x8] sm:$0xff] %vm45, %v280
      $region21: #{tpu_custom_call.1} parent=13 // loop_footer
        %s194 = sadd.s32 1, %s190
      $region22: #{tpu_custom_call.1} parent=13 // loop_footer_branch
        %189 = sbr.rel target = $region18
      $region23: #{tpu_custom_call.1} parent=13 // loop_exit
        _
    $region14: #{tpu_custom_call.1} parent=1 // loop_footer
      %s169 = sadd.s32 1, %s165
    $region15: #{tpu_custom_call.1} parent=1 // loop_footer_branch
      %164 = sbr.rel target = $region11
    $region16: #{tpu_custom_call.1} parent=1 // loop_exit
      _
    // Predicated region
    $region24: #{tpu_custom_call.1} parent=1 // pred_check
      _
    $region25: #{tpu_custom_call.1} parent=1 // pred_check_branch
      %290 = sbr.rel (0) target = $region27
    $region26: #{tpu_custom_call.1} parent=1 // pred_region
      %s292 = ssub.s32 2048, 2048
      %293 = vsyncadd [#allocation7], %s292
      %s294 = sshll.u32 [#allocation8], 4
      %s295 = int_to_ptr.vmem [resolvable:$true] %s294
      %300 = dma.vmem_to_hbm [thread:$0]  %s295, 2048, %s2, [#allocation7], 128, 128, 8
    $region27: #{tpu_custom_call.1} parent=1 // pred_fallthru
      _
    // Predicated region
    $region28: #{tpu_custom_call.1} parent=1 // pred_check
      _
    $region29: #{tpu_custom_call.1} parent=1 // pred_check_branch
      %302 = sbr.rel (0) target = $region31
    $region30: #{tpu_custom_call.1} parent=1 // pred_region
      %303 = dma.done [#allocation7], 2048
    $region31: #{tpu_custom_call.1} parent=1 // pred_fallthru
      _
    %304 = vsyncpa [#allocation6], 1
    %305 = vsyncpa [#allocation7], 1

</llo_original>
